<compile_context>
chip_gen: v7x
topology: tpu7x:2x2x1
jax: 0.10.0
libtpu: 0.0.40
codegen_flags: <defaults>
</compile_context>

<pallas_src>
import functools

import jax
import jax.numpy as jnp
from jax.experimental import pallas as pl
from jax.experimental.pallas import tpu as pltpu

LN_EPS = 1e-5
NEG_INF = -1e9       # large-negative stand-in for -inf (keeps softmax NaN-free)
SUBLANE = 16         # row granularity satisfying both f32 (8) and bf16 (16)
VMEM_BUDGET = 48 * 1024 * 1024   # safe on v7x (64 MiB physical); v5e/v6e have 128


def _round_up(a, m):
    return -(-a // m) * m


def _cdiv(a, b):
    return -(-a // b)


def _vmem_bytes(tile, input_dim, mlp, n_act_aln, n_act_pad):
    """Rough per-step VMEM estimate (double-buffered blocks + live temps)."""
    f32, bf16, db = 4, 2, 2
    inputs = db * (tile * input_dim * bf16          # x
                   + tile * n_act_aln * f32         # compact mask
                   + input_dim * mlp * bf16         # w1
                   + 3 * mlp * f32                  # b1, gamma, beta
                   + mlp * n_act_pad * bf16         # w23
                   + n_act_pad * f32)               # b23
    outputs = db * (tile * n_act_pad * bf16 + tile * n_act_pad * f32)
    scratch = tile * mlp * f32 * 3 + tile * n_act_pad * f32 * 3
    return inputs + outputs + scratch


def action_head_kernel(x_ref, mask_ref,
                       w1_ref, b1_ref, g_ref, beta_ref,
                       w23_ref, b23_ref,
                       logits_ref, probs_ref):
    mlp = w1_ref.shape[1]
    n_act_aln = mask_ref.shape[1]       # compact mask width (16)
    n_act_pad = logits_ref.shape[1]     # lane-dense output width (128)

    # mlp_1: Linear(input_dim -> mlp); bf16 MXU inputs, f32 accumulation.
    h = jnp.dot(x_ref[...], w1_ref[...],
                preferred_element_type=jnp.float32) + b1_ref[...]

    # LayerNorm(mlp), eps=1e-5, biased variance -- single-pass statistics.
    inv_n = 1.0 / mlp
    s1 = jnp.sum(h, axis=-1, keepdims=True)
    s2 = jnp.sum(h * h, axis=-1, keepdims=True)
    mu = s1 * inv_n
    var = s2 * inv_n - mu * mu
    hn = (h - mu) * jax.lax.rsqrt(var + LN_EPS) * g_ref[...] + beta_ref[...]

    # ReLU, back to bf16 for the MXU.
    r = jnp.maximum(hn, 0.0).astype(w23_ref.dtype)

    # Fused mlp_2 + categorical linear: logits = r @ (w2 @ w3) + (b2 @ w3 + b3).
    logits = jnp.dot(r, w23_ref[...],
                     preferred_element_type=jnp.float32) + b23_ref[...]

    # Expand the compact per-row mask (n_act_aln lanes) to the padded lane
    # width with a tiny aligned selector matmul; lanes >= n_act_aln get 0.
    valid = (mask_ref[...] > 0.0).astype(w23_ref.dtype)        # exact 0/1
    row = jax.lax.broadcasted_iota(jnp.int32, (n_act_aln, n_act_pad), 0)
    col = jax.lax.broadcasted_iota(jnp.int32, (n_act_aln, n_act_pad), 1)
    sel = (row == col).astype(w23_ref.dtype)                   # (16, 128) "identity"
    valid_wide = jnp.dot(valid, sel, preferred_element_type=jnp.float32)

    # masked_fill(mask == 0, -inf) with a large-negative stand-in.
    masked = jnp.where(valid_wide > 0.0, logits, NEG_INF)
    logits_ref[...] = masked.astype(logits_ref.dtype)

    # softmax over the padded action dim (padded/invalid lanes underflow to 0);
    # exact f32 reciprocal so probs sum to 1 to float precision.
    m = jnp.max(masked, axis=-1, keepdims=True)
    e = jnp.exp(masked - m)
    denom = jnp.sum(e, axis=-1, keepdims=True)
    probs_ref[...] = (e * (1.0 / denom)).astype(probs_ref.dtype)


@functools.partial(jax.jit, static_argnames=("batch_tile",))
def action_head_forward(x, mask, params, batch_tile=2048):
    B, input_dim = x.shape
    mlp = params["w1"].shape[1]
    n_act = params["w3"].shape[1]
    n_act_pad = _round_up(n_act, 128)       # lane-dense output stores
    n_act_aln = _round_up(n_act, SUBLANE)   # compact, aligned mask width

    # ---- row-tile / grid selection ------------------------------------------
    b_sub = _round_up(B, SUBLANE)
    tgt = max(SUBLANE, _round_up(min(batch_tile, b_sub), SUBLANE))
    while tgt > SUBLANE and _vmem_bytes(tgt, input_dim, mlp,
                                        n_act_aln, n_act_pad) > VMEM_BUDGET:
        tgt = max(SUBLANE, _round_up(tgt // 2, SUBLANE))
    n_steps = _cdiv(b_sub, tgt)
    # keep the "parallel" grid even (v7x megacore balance) when every step
    # still gets at least SUBLANE real rows
    if n_steps % 2 == 1 and b_sub >= (n_steps + 1) * SUBLANE:
        n_steps += 1
    tile = _round_up(_cdiv(b_sub, n_steps), SUBLANE)
    n_steps = _cdiv(b_sub, tile)            # drop any pure-padding steps
    B_pad = n_steps * tile
    grid = (n_steps,)

    vmem_limit = int(min(VMEM_BUDGET,
                         max(16 * 1024 * 1024,
                             2 * _vmem_bytes(tile, input_dim, mlp,
                                             n_act_aln, n_act_pad))))

    # ---- prepare operands (padding + dtype) ----------------------------------
    x_p = jnp.pad(x, ((0, B_pad - B), (0, 0))).astype(jnp.bfloat16)
    # compact mask: rows padded with 0 (-> fully masked), columns only to 16
    mask_p = jnp.pad(mask.astype(jnp.float32),
                     ((0, B_pad - B), (0, n_act_aln - n_act)))

    w1 = params["w1"].astype(jnp.bfloat16)
    w3_pad = jnp.pad(params["w3"], ((0, 0), (0, n_act_pad - n_act)))
    b3_pad = jnp.pad(params["b3"], ((0, 0), (0, n_act_pad - n_act)))
    # fold mlp_2 into the categorical head (no nonlinearity in between); the
    # fold is done in f32, then cast to bf16 for the MXU.
    w23 = (params["w2"] @ w3_pad).astype(jnp.bfloat16)
    b23 = (params["b2"] @ w3_pad + b3_pad).astype(jnp.float32)
    b1, gamma, beta = params["b1"], params["gamma"], params["beta"]

    def row_map(i):
        return (i, 0)

    def rep_map(i):
        return (0, 0)

    out_shapes = (
        jax.ShapeDtypeStruct((B_pad, n_act_pad), jnp.bfloat16),  # masked logits
        jax.ShapeDtypeStruct((B_pad, n_act_pad), jnp.float32),   # probs
    )

    logits_p, probs_p = pl.pallas_call(
        action_head_kernel,
        out_shape=out_shapes,
        grid_spec=pltpu.PrefetchScalarGridSpec(
            num_scalar_prefetch=0,
            grid=grid,
            in_specs=[
                pl.BlockSpec((tile, input_dim), row_map),     # x (bf16)
                pl.BlockSpec((tile, n_act_aln), row_map),     # compact mask (f32)
                pl.BlockSpec((input_dim, mlp), rep_map),      # w1 (in,out) bf16
                pl.BlockSpec((1, mlp), rep_map),              # b1
                pl.BlockSpec((1, mlp), rep_map),              # ln gamma
                pl.BlockSpec((1, mlp), rep_map),              # ln beta
                pl.BlockSpec((mlp, n_act_pad), rep_map),      # w23 = w2@w3 (bf16)
                pl.BlockSpec((1, n_act_pad), rep_map),        # b23 = b2@w3 + b3
            ],
            out_specs=[
                pl.BlockSpec((tile, n_act_pad), row_map),
                pl.BlockSpec((tile, n_act_pad), row_map),
            ],
        ),
        compiler_params=pltpu.CompilerParams(
            dimension_semantics=("parallel",),
            vmem_limit_bytes=vmem_limit),
    )(x_p, mask_p, w1, b1, gamma, beta, w23, b23)

    # slice off row / action-lane padding; logits stay bf16 (they were produced
    # by bf16 matmuls anyway), probs are f32.
    return logits_p[:B, :n_act], probs_p[:B, :n_act]


def init_params(key, input_dim, mlp_size, n_actions):
    """Deterministic synthetic params; weights stored as (in, out), f32."""
    ks = jax.random.split(key, 6)

    def lin(kw, kb, fan_in, fan_out):
        bound = 1.0 / jnp.sqrt(fan_in)
        w = jax.random.uniform(kw, (fan_in, fan_out), jnp.float32, -bound, bound)
        b = jax.random.uniform(kb, (1, fan_out), jnp.float32, -bound, bound)
        return w, b

    w1, b1 = lin(ks[0], ks[1], input_dim, mlp_size)
    w2, b2 = lin(ks[2], ks[3], mlp_size, mlp_size)
    w3, b3 = lin(ks[4], ks[5], mlp_size, n_actions)
    return {
        "w1": w1, "b1": b1,
        "gamma": jnp.ones((1, mlp_size), jnp.float32),
        "beta": jnp.zeros((1, mlp_size), jnp.float32),
        "w2": w2, "b2": b2,
        "w3": w3, "b3": b3,
    }


def reference_forward(x, mask, p):
    """Pure-JAX f32 reference for correctness checking."""
    h = x @ p["w1"] + p["b1"]
    mu = h.mean(-1, keepdims=True)
    var = ((h - mu) ** 2).mean(-1, keepdims=True)
    h = (h - mu) / jnp.sqrt(var + LN_EPS) * p["gamma"] + p["beta"]
    h = jnp.maximum(h, 0.0)
    h = h @ p["w2"] + p["b2"]
    logits = h @ p["w3"] + p["b3"]
    masked = jnp.where(mask > 0, logits, NEG_INF)
    probs = jax.nn.softmax(masked, axis=-1)
    return masked, probs


if __name__ == "__main__":
    # small shapes; B=12 is deliberately not a multiple of the tile so the
    # wrapper's row-padding path is exercised.
    B, INPUT_DIM, MLP_SIZE, N_ACTIONS = 12, 32, 128, 10

    key = jax.random.PRNGKey(0)
    kx, km, kp = jax.random.split(key, 3)

    x = jax.random.normal(kx, (B, INPUT_DIM), jnp.float32)
    mask = (jax.random.uniform(km, (B, N_ACTIONS)) > 0.3).astype(jnp.float32)
    # ensure at least one valid action per row (all-zero-mask rows would be a
    # degenerate/NaN case in the PyTorch original too)
    mask = mask.at[:, 0].set(1.0)

    params = init_params(kp, INPUT_DIM, MLP_SIZE, N_ACTIONS)

    logits, probs = action_head_forward(x, mask, params)
    jax.block_until_ready((logits, probs))

    ref_logits, ref_probs = reference_forward(x, mask, params)
    assert logits.shape == (B, N_ACTIONS) and probs.shape == (B, N_ACTIONS)

    valid = mask > 0
    logits_f32 = logits.astype(jnp.float32)
    # valid entries: match the f32 reference within bf16-matmul tolerance
    assert jnp.allclose(jnp.where(valid, logits_f32, 0.0),
                        jnp.where(valid, ref_logits, 0.0),
                        atol=5e-2, rtol=5e-2)
    # invalid entries: hugely negative (stand-in for -inf / masked_fill)
    assert bool(jnp.all(jnp.where(valid, True, logits_f32 < NEG_INF / 2)))
    # probabilities: close to reference and a proper distribution
    assert jnp.allclose(probs, ref_probs, atol=2e-2, rtol=2e-2)
    assert jnp.allclose(probs.sum(-1), 1.0, atol=1e-3)
    assert bool(jnp.all(jnp.where(valid, True, probs < 1e-6)))

    print("KERNEL_OK")
</pallas_src>

<mosaic_0001>
module attributes {stable_mosaic.version = 11 : i64} {
  func.func @action_head_kernel(%arg0: i32, %arg1: memref<16x32xbf16, #tpu.memory_space<vmem>>, %arg2: memref<16x16xf32, #tpu.memory_space<vmem>>, %arg3: memref<32x128xbf16, #tpu.memory_space<vmem>>, %arg4: memref<1x128xf32, #tpu.memory_space<vmem>>, %arg5: memref<1x128xf32, #tpu.memory_space<vmem>>, %arg6: memref<1x128xf32, #tpu.memory_space<vmem>>, %arg7: memref<128x128xbf16, #tpu.memory_space<vmem>>, %arg8: memref<1x128xf32, #tpu.memory_space<vmem>>, %arg9: memref<16x128xbf16, #tpu.memory_space<vmem>>, %arg10: memref<16x128xf32, #tpu.memory_space<vmem>>) attributes {dimension_semantics = [#tpu.dimension_semantics<parallel>], iteration_bounds = array<i64: 1>, scalar_prefetch = 0 : i64, scratch_operands = 0 : i64, tpu.core_type = #tpu.core_type<tc>, window_params = [{transform_indices = @transform_0, window_bounds = array<i64: 16, 32>}, {transform_indices = @transform_1, window_bounds = array<i64: 16, 16>}, {pipeline_mode = #tpu.pipeline_mode<synchronous>, transform_indices = @transform_2, window_bounds = array<i64: 32, 128>}, {pipeline_mode = #tpu.pipeline_mode<synchronous>, transform_indices = @transform_3, window_bounds = array<i64: 1, 128>}, {pipeline_mode = #tpu.pipeline_mode<synchronous>, transform_indices = @transform_4, window_bounds = array<i64: 1, 128>}, {pipeline_mode = #tpu.pipeline_mode<synchronous>, transform_indices = @transform_5, window_bounds = array<i64: 1, 128>}, {pipeline_mode = #tpu.pipeline_mode<synchronous>, transform_indices = @transform_6, window_bounds = array<i64: 128, 128>}, {pipeline_mode = #tpu.pipeline_mode<synchronous>, transform_indices = @transform_7, window_bounds = array<i64: 1, 128>}, {transform_indices = @transform_8, window_bounds = array<i64: 16, 128>}, {transform_indices = @transform_9, window_bounds = array<i64: 16, 128>}]} {
    %c0 = arith.constant 0 : index
    %c0_0 = arith.constant 0 : index
    %0 = vector.load %arg1[%c0, %c0_0] : memref<16x32xbf16, #tpu.memory_space<vmem>>, vector<16x32xbf16>
    %c0_1 = arith.constant 0 : index
    %c0_2 = arith.constant 0 : index
    %1 = vector.load %arg3[%c0_1, %c0_2] : memref<32x128xbf16, #tpu.memory_space<vmem>>, vector<32x128xbf16>
    %cst = arith.constant dense<0.000000e+00> : vector<16x128xf32>
    %2 = tpu.matmul %0, %1, %cst {dimension_numbers = #tpu.dot_dimension_numbers<[1], [0], [0], [1], [0, 0, 1, 1], [], []>} : vector<16x32xbf16>, vector<32x128xbf16>, vector<16x128xf32> -> vector<16x128xf32>
    %c0_3 = arith.constant 0 : index
    %c0_4 = arith.constant 0 : index
    %3 = vector.load %arg4[%c0_3, %c0_4] : memref<1x128xf32, #tpu.memory_space<vmem>>, vector<1x128xf32>
    %4 = vector.broadcast %3 : vector<1x128xf32> to vector<16x128xf32>
    %5 = arith.addf %2, %4 : vector<16x128xf32>
    %cst_5 = arith.constant dense<0.000000e+00> : vector<16xf32>
    %6 = vector.multi_reduction <add>, %5, %cst_5 [1] : vector<16x128xf32> to vector<16xf32>
    %7 = vector.shape_cast %6 : vector<16xf32> to vector<16x1xf32>
    %8 = arith.mulf %5, %5 : vector<16x128xf32>
    %cst_6 = arith.constant dense<0.000000e+00> : vector<16xf32>
    %9 = vector.multi_reduction <add>, %8, %cst_6 [1] : vector<16x128xf32> to vector<16xf32>
    %10 = vector.shape_cast %9 : vector<16xf32> to vector<16x1xf32>
    %cst_7 = arith.constant 7.812500e-03 : f32
    %11 = vector.broadcast %cst_7 : f32 to vector<16x1xf32>
    %12 = arith.mulf %7, %11 : vector<16x1xf32>
    %cst_8 = arith.constant 7.812500e-03 : f32
    %13 = vector.broadcast %cst_8 : f32 to vector<16x1xf32>
    %14 = arith.mulf %10, %13 : vector<16x1xf32>
    %15 = arith.mulf %12, %12 : vector<16x1xf32>
    %16 = arith.subf %14, %15 : vector<16x1xf32>
    %17 = vector.broadcast %12 : vector<16x1xf32> to vector<16x128xf32>
    %18 = arith.subf %5, %17 : vector<16x128xf32>
    %cst_9 = arith.constant 9.99999974E-6 : f32
    %19 = vector.broadcast %cst_9 : f32 to vector<16x1xf32>
    %20 = arith.addf %16, %19 : vector<16x1xf32>
    %21 = math.rsqrt %20 : vector<16x1xf32>
    %22 = vector.broadcast %21 : vector<16x1xf32> to vector<16x128xf32>
    %23 = arith.mulf %18, %22 : vector<16x128xf32>
    %c0_10 = arith.constant 0 : index
    %c0_11 = arith.constant 0 : index
    %24 = vector.load %arg5[%c0_10, %c0_11] : memref<1x128xf32, #tpu.memory_space<vmem>>, vector<1x128xf32>
    %25 = vector.broadcast %24 : vector<1x128xf32> to vector<16x128xf32>
    %26 = arith.mulf %23, %25 : vector<16x128xf32>
    %c0_12 = arith.constant 0 : index
    %c0_13 = arith.constant 0 : index
    %27 = vector.load %arg6[%c0_12, %c0_13] : memref<1x128xf32, #tpu.memory_space<vmem>>, vector<1x128xf32>
    %28 = vector.broadcast %27 : vector<1x128xf32> to vector<16x128xf32>
    %29 = arith.addf %26, %28 : vector<16x128xf32>
    %cst_14 = arith.constant 0.000000e+00 : f32
    %30 = vector.broadcast %cst_14 : f32 to vector<16x128xf32>
    %31 = arith.maximumf %29, %30 : vector<16x128xf32>
    %32 = arith.truncf %31 : vector<16x128xf32> to vector<16x128xbf16>
    %c0_15 = arith.constant 0 : index
    %c0_16 = arith.constant 0 : index
    %33 = vector.load %arg7[%c0_15, %c0_16] : memref<128x128xbf16, #tpu.memory_space<vmem>>, vector<128x128xbf16>
    %cst_17 = arith.constant dense<0.000000e+00> : vector<16x128xf32>
    %34 = tpu.matmul %32, %33, %cst_17 {dimension_numbers = #tpu.dot_dimension_numbers<[1], [0], [0], [1], [0, 0, 1, 1], [], []>} : vector<16x128xbf16>, vector<128x128xbf16>, vector<16x128xf32> -> vector<16x128xf32>
    %c0_18 = arith.constant 0 : index
    %c0_19 = arith.constant 0 : index
    %35 = vector.load %arg8[%c0_18, %c0_19] : memref<1x128xf32, #tpu.memory_space<vmem>>, vector<1x128xf32>
    %36 = vector.broadcast %35 : vector<1x128xf32> to vector<16x128xf32>
    %37 = arith.addf %34, %36 : vector<16x128xf32>
    %c0_20 = arith.constant 0 : index
    %c0_21 = arith.constant 0 : index
    %38 = vector.load %arg2[%c0_20, %c0_21] : memref<16x16xf32, #tpu.memory_space<vmem>>, vector<16x16xf32>
    %cst_22 = arith.constant 0.000000e+00 : f32
    %39 = vector.broadcast %cst_22 : f32 to vector<16x16xf32>
    %40 = arith.cmpf ogt, %38, %39 : vector<16x16xf32>
    %41 = arith.extui %40 : vector<16x16xi1> to vector<16x16xi32>
    %42 = arith.sitofp %41 : vector<16x16xi32> to vector<16x16xf32>
    %43 = arith.truncf %42 : vector<16x16xf32> to vector<16x16xbf16>
    %44 = tpu.iota {dimensions = array<i32: 0>} : vector<16x128xi32>
    %45 = tpu.iota {dimensions = array<i32: 1>} : vector<16x128xi32>
    %46 = arith.cmpi eq, %44, %45 : vector<16x128xi32>
    %47 = arith.extui %46 : vector<16x128xi1> to vector<16x128xi32>
    %48 = arith.sitofp %47 : vector<16x128xi32> to vector<16x128xf32>
    %49 = arith.truncf %48 : vector<16x128xf32> to vector<16x128xbf16>
    %cst_23 = arith.constant dense<0.000000e+00> : vector<16x128xf32>
    %50 = tpu.matmul %43, %49, %cst_23 {dimension_numbers = #tpu.dot_dimension_numbers<[1], [0], [0], [1], [0, 0, 1, 1], [], []>} : vector<16x16xbf16>, vector<16x128xbf16>, vector<16x128xf32> -> vector<16x128xf32>
    %cst_24 = arith.constant 0.000000e+00 : f32
    %51 = vector.broadcast %cst_24 : f32 to vector<16x128xf32>
    %52 = arith.cmpf ogt, %50, %51 : vector<16x128xf32>
    %cst_25 = arith.constant -1.000000e+09 : f32
    %53 = vector.broadcast %cst_25 : f32 to vector<16x128xf32>
    %54 = arith.select %52, %37, %53 : vector<16x128xi1>, vector<16x128xf32>
    %55 = arith.truncf %54 : vector<16x128xf32> to vector<16x128xbf16>
    %c0_26 = arith.constant 0 : index
    %c0_27 = arith.constant 0 : index
    %56 = vector.load %arg9[%c0_26, %c0_27] : memref<16x128xbf16, #tpu.memory_space<vmem>>, vector<16x128xbf16>
    tpu.vector_store %arg9[%c0_26, %c0_27], %55 {strides = array<i32>} : memref<16x128xbf16, #tpu.memory_space<vmem>>, vector<16x128xbf16>,
    %cst_28 = arith.constant dense<0xFF800000> : vector<16xf32>
    %57 = vector.multi_reduction <maximumf>, %54, %cst_28 [1] : vector<16x128xf32> to vector<16xf32>
    %58 = vector.shape_cast %57 : vector<16xf32> to vector<16x1xf32>
    %59 = vector.broadcast %58 : vector<16x1xf32> to vector<16x128xf32>
    %60 = arith.subf %54, %59 : vector<16x128xf32>
    %61 = math.exp %60 : vector<16x128xf32>
    %cst_29 = arith.constant dense<0.000000e+00> : vector<16xf32>
    %62 = vector.multi_reduction <add>, %61, %cst_29 [1] : vector<16x128xf32> to vector<16xf32>
    %63 = vector.shape_cast %62 : vector<16xf32> to vector<16x1xf32>
    %cst_30 = arith.constant 1.000000e+00 : f32
    %64 = vector.broadcast %cst_30 : f32 to vector<16x1xf32>
    %65 = arith.divf %64, %63 : vector<16x1xf32>
    %66 = vector.broadcast %65 : vector<16x1xf32> to vector<16x128xf32>
    %67 = arith.mulf %61, %66 : vector<16x128xf32>
    %c0_31 = arith.constant 0 : index
    %c0_32 = arith.constant 0 : index
    %68 = vector.load %arg10[%c0_31, %c0_32] : memref<16x128xf32, #tpu.memory_space<vmem>>, vector<16x128xf32>
    tpu.vector_store %arg10[%c0_31, %c0_32], %67 {strides = array<i32>} : memref<16x128xf32, #tpu.memory_space<vmem>>, vector<16x128xf32>,
    return
  }
  func.func @transform_0(%arg0: i32) -> (i32, i32) {
    %c0_i32 = arith.constant 0 : i32
    %c0_i32_0 = arith.constant 0 : i32
    return %arg0, %c0_i32 : i32, i32
  }
  func.func @transform_1(%arg0: i32) -> (i32, i32) {
    %c0_i32 = arith.constant 0 : i32
    %c0_i32_0 = arith.constant 0 : i32
    return %arg0, %c0_i32 : i32, i32
  }
  func.func @transform_2(%arg0: i32) -> (i32, i32) {
    %c0_i32 = arith.constant 0 : i32
    %c0_i32_0 = arith.constant 0 : i32
    %c0_i32_1 = arith.constant 0 : i32
    return %c0_i32, %c0_i32_0 : i32, i32
  }
  func.func @transform_3(%arg0: i32) -> (i32, i32) {
    %c0_i32 = arith.constant 0 : i32
    %c0_i32_0 = arith.constant 0 : i32
    %c0_i32_1 = arith.constant 0 : i32
    return %c0_i32, %c0_i32_0 : i32, i32
  }
  func.func @transform_4(%arg0: i32) -> (i32, i32) {
    %c0_i32 = arith.constant 0 : i32
    %c0_i32_0 = arith.constant 0 : i32
    %c0_i32_1 = arith.constant 0 : i32
    return %c0_i32, %c0_i32_0 : i32, i32
  }
  func.func @transform_5(%arg0: i32) -> (i32, i32) {
    %c0_i32 = arith.constant 0 : i32
    %c0_i32_0 = arith.constant 0 : i32
    %c0_i32_1 = arith.constant 0 : i32
    return %c0_i32, %c0_i32_0 : i32, i32
  }
  func.func @transform_6(%arg0: i32) -> (i32, i32) {
    %c0_i32 = arith.constant 0 : i32
    %c0_i32_0 = arith.constant 0 : i32
    %c0_i32_1 = arith.constant 0 : i32
    return %c0_i32, %c0_i32_0 : i32, i32
  }
  func.func @transform_7(%arg0: i32) -> (i32, i32) {
    %c0_i32 = arith.constant 0 : i32
    %c0_i32_0 = arith.constant 0 : i32
    %c0_i32_1 = arith.constant 0 : i32
    return %c0_i32, %c0_i32_0 : i32, i32
  }
  func.func @transform_8(%arg0: i32) -> (i32, i32) {
    %c0_i32 = arith.constant 0 : i32
    %c0_i32_0 = arith.constant 0 : i32
    return %arg0, %c0_i32 : i32, i32
  }
  func.func @transform_9(%arg0: i32) -> (i32, i32) {
    %c0_i32 = arith.constant 0 : i32
    %c0_i32_0 = arith.constant 0 : i32
    return %arg0, %c0_i32 : i32, i32
  }
}

</mosaic_0001>

<llo_original>
// kernel: action_head_forward.1
$region0: #{action_head_forward.1}
  #allocation0 [shape = 'u32[]', space=smem, size = 0x4, offset = 0x4, fixed_abs, tag = 'smem constant byte address 0x4 - core index']
  #allocation1 [shape = 'u32[144,128]{1,0:T(1,128)}', space=vmem, size = 0x12000, scoped, tag = 'internal scratch']
  %s0 = inlined_call_operand.vmem [shape: bf16[16,32], index: 0, kind: input, shape index: {}]
  %s1 = inlined_call_operand.vmem [shape: f32[16,16], index: 1, kind: input, shape index: {}]
  %s2 = inlined_call_operand.vmem [shape: bf16[32,128], index: 2, kind: input, shape index: {}]
  %s3 = inlined_call_operand.vmem [shape: f32[1,128], index: 3, kind: input, shape index: {}]
  %s4 = inlined_call_operand.vmem [shape: f32[1,128], index: 4, kind: input, shape index: {}]
  %s5 = inlined_call_operand.vmem [shape: f32[1,128], index: 5, kind: input, shape index: {}]
  %s6 = inlined_call_operand.vmem [shape: bf16[128,128], index: 6, kind: input, shape index: {}]
  %s7 = inlined_call_operand.vmem [shape: f32[1,128], index: 7, kind: input, shape index: {}]
  %s8 = inlined_call_operand.hbm [shape: bf16[16,128], index: 8, kind: output, shape index: {0}]
  %s9 = inlined_call_operand.hbm [shape: f32[16,128], index: 9, kind: output, shape index: {1}]
  %10 = xla_tuple %s8, %s9
  %s11 = sld [smem:[#allocation0]]
  $region50: #{action_head_forward.1} parent=0
    _
  %s13 = ssub.s32 1, %s11
  %s14 = scalar_select 0, %s13, %s11
  $region1: #{action_head_forward.1} parent=0
    #allocation2 [shape = 'u8[4096]{0}', space=vmem, size = 0x1000, scoped, tag = 'output window, operand 0, single buffered']
    #allocation3 [shape = 's32[1]{0}', space=sflag, size = 0x4, scoped, tag = 'scoped memory for action_head_forward.1']
    #allocation4 [shape = 'u8[8192]{0}', space=vmem, size = 0x2000, scoped, tag = 'output window, operand 1, single buffered']
    #allocation5 [shape = 's32[1]{0}', space=sflag, size = 0x4, scoped, tag = 'scoped memory for action_head_forward.1']
    %15 = vsyncpa [#allocation3], 0
    %16 = vsyncpa [#allocation5], 0
    // Predicated region
    $region2: #{action_head_forward.1} parent=1 // pred_check
      _
    $region3: #{action_head_forward.1} parent=1 // pred_check_branch
      %18 = sbr.rel (0) target = $region5
    $region4: #{action_head_forward.1} parent=1 // pred_region
      _
    $region5: #{action_head_forward.1} parent=1 // pred_fallthru
      _
    // Predicated region
    $region6: #{action_head_forward.1} parent=1 // pred_check
      _
    $region7: #{action_head_forward.1} parent=1 // pred_check_branch
      %20 = sbr.rel (0) target = $region9
    $region8: #{action_head_forward.1} parent=1 // pred_region
      _
    $region9: #{action_head_forward.1} parent=1 // pred_fallthru
      _
    // Predicated region
    $region10: #{action_head_forward.1} parent=1 // pred_check
      _
    $region11: #{action_head_forward.1} parent=1 // pred_check_branch
      %22 = sbr.rel (0) target = $region13
    $region12: #{action_head_forward.1} parent=1 // pred_region
      _
    $region13: #{action_head_forward.1} parent=1 // pred_fallthru
      _
    // Predicated region
    $region14: #{action_head_forward.1} parent=1 // pred_check
      _
    $region15: #{action_head_forward.1} parent=1 // pred_check_branch
      %24 = sbr.rel (0) target = $region17
    $region16: #{action_head_forward.1} parent=1 // pred_region
      _
    $region17: #{action_head_forward.1} parent=1 // pred_fallthru
      _
    // Predicated region
    $region18: #{action_head_forward.1} parent=1 // pred_check
      _
    $region19: #{action_head_forward.1} parent=1 // pred_check_branch
      %26 = sbr.rel (0) target = $region21
    $region20: #{action_head_forward.1} parent=1 // pred_region
      _
    $region21: #{action_head_forward.1} parent=1 // pred_fallthru
      _
    // Predicated region
    $region22: #{action_head_forward.1} parent=1 // pred_check
      _
    $region23: #{action_head_forward.1} parent=1 // pred_check_branch
      %28 = sbr.rel (0) target = $region25
    $region24: #{action_head_forward.1} parent=1 // pred_region
      _
    $region25: #{action_head_forward.1} parent=1 // pred_fallthru
      _
    // Predicated region
    $region26: #{action_head_forward.1} parent=1 // pred_check
      _
    $region27: #{action_head_forward.1} parent=1 // pred_check_branch
      %30 = sbr.rel (0) target = $region29
    $region28: #{action_head_forward.1} parent=1 // pred_region
      _
    $region29: #{action_head_forward.1} parent=1 // pred_fallthru
      _
    // Predicated region
    $region30: #{action_head_forward.1} parent=1 // pred_check
      _
    $region31: #{action_head_forward.1} parent=1 // pred_check_branch
      %32 = sbr.rel (0) target = $region33
    $region32: #{action_head_forward.1} parent=1 // pred_region
      _
    $region33: #{action_head_forward.1} parent=1 // pred_fallthru
      _
    %v34 = vld [vmem:[%s0] sm:$0xf]
    %v35 = vld [vmem:[%s0 + $0x4] sm:$0xf]
    %v36 = vld [vmem:[%s2] sm:$0xf]
    %v37 = vld [vmem:[%s2 + $0x4] sm:$0xf]
    %v38 = vld [vmem:[%s2 + $0x8] sm:$0xf]
    %v39 = vld [vmem:[%s2 + $0xc] sm:$0xf]
    %v40 = vld [vmem:[%s3] sm:$0x1]
    %v42 = vlaneseq
    %v43 = vshrl.u32 %v42, 7
    %v44 = vsub.s32 0, %v43
    %v45 = vrot.slane %v40, %v44
    %v49 = vunpack.c.l.b16 %v34
    %v50 = vunpack.c.l.b16 %v35
    %v51 = vpack.c.b16 %v50, %v49
    %v56 = vunpack.c.l.b16 %v36
    %v57 = vunpack.c.l.b16 %v37
    %v58 = vunpack.c.l.b16 %v38
    %v59 = vunpack.c.l.b16 %v39
    %v60 = vpack.c.b16 %v57, %v56
    %v61 = vpack.c.b16 %v59, %v58
    %vm64 = vcmask 261120
    %v66 = vsel %vm64, %v51, 0
    %68 = vmatprep.subr.bf16.mxu0 0
    %69 = vmatpush1.bf16.msra.mxu0 %v60
    %70 = vmatprep.subr.bf16.mxu0 0
    %71 = vmatpush1.bf16.msra.mxu0 %v61
    %72 = vmatprep.subr.bf16.mxu0 0
    %73 = vmatpush1.bf16.msra.mxu0 0
    %74 = vmatprep.subr.bf16.mxu0 0
    %75 = vmatpush1.bf16.msra.mxu0 0
    %76 = vmatprep.subr.bf16.mxu0 0
    %77 = vmatpush1.bf16.msra.mxu0 0
    %78 = vmatprep.subr.bf16.mxu0 0
    %79 = vmatpush1.bf16.msra.mxu0 0
    %80 = vmatprep.subr.bf16.mxu0 0
    %81 = vmatpush1.bf16.msra.mxu0 0
    %82 = vmatprep.subr.bf16.mxu0 0
    %83 = vmatpush1.bf16.msra.mxu0 0
    %84 = vmatprep.subr.bf16.mxu0 0
    %85 = vmatpush1.bf16.msra.mxu0 0
    %86 = vmatprep.subr.bf16.mxu0 0
    %87 = vmatpush1.bf16.msra.mxu0 0
    %88 = vmatprep.subr.bf16.mxu0 0
    %89 = vmatpush1.bf16.msra.mxu0 0
    %90 = vmatprep.subr.bf16.mxu0 0
    %91 = vmatpush1.bf16.msra.mxu0 0
    %92 = vmatprep.subr.bf16.mxu0 0
    %93 = vmatpush1.bf16.msra.mxu0 0
    %94 = vmatprep.subr.bf16.mxu0 0
    %95 = vmatpush1.bf16.msra.mxu0 0
    %96 = vmatprep.subr.bf16.mxu0 0
    %97 = vmatpush1.bf16.msra.mxu0 0
    %98 = vmatprep.subr.bf16.mxu0 0
    %99 = vmatpush1.bf16.msra.mxu0 0
    %100 = vmatprep.mubr.bf16.mxu0 0
    %101 = vmatmul.mubr.bf16.gmra.mrb[0].mxu0 %v66
    %v102 = vpop.f32.mrb[0].mxu0
    %v103 = vadd.f32 %v45, %v102
    %v104 = vpop.f32.mrb[0].mxu0
    %v105 = vpop.f32.mrb[0].mxu0
    %v106 = vadd.f32 %v45, %v105
    %v107 = vpop.f32.mrb[0].mxu0
    %108 = vdwg.mxu0
    %109 = vadd.xlane.f32.xlu0 %v103
    %v110 = vpop.xlane.xlu0 %109
    %111 = vadd.xlane.f32.xlu0 %v106
    %v112 = vpop.xlane.xlu0 %111
    %v113 = vmul.f32 %v103, %v103
    %v114 = vmul.f32 %v106, %v106
    %115 = vadd.xlane.f32.xlu0 %v113
    %v116 = vpop.xlane.xlu0 %115
    %117 = vadd.xlane.f32.xlu0 %v114
    %v118 = vpop.xlane.xlu0 %117
    %v119 = vmul.f32 %v110, 0.0078125
    %v120 = vmul.f32 %v112, 0.0078125
    %v121 = vmul.f32 %v116, 0.0078125
    %v122 = vmul.f32 %v118, 0.0078125
    %v123 = vmul.f32 %v119, %v119
    %v124 = vmul.f32 %v120, %v120
    %v125 = vsub.f32 %v121, %v123
    %v126 = vsub.f32 %v122, %v124
    %v127 = vsub.f32 %v103, %v119
    %v128 = vsub.f32 %v106, %v120
    %v129 = vadd.f32 %v125, 1e-05
    %v130 = vadd.f32 %v126, 1e-05
    %v131 = vrsqrt.pop %v129
    %v132 = vrsqrt.pop %v130
    %v133 = vmul.f32 %v127, %v131
    %v134 = vmul.f32 %v128, %v132
    %v135 = vld [vmem:[%s4] sm:$0x1]
    %v137 = vlaneseq
    %v138 = vshrl.u32 %v137, 7
    %v139 = vsub.s32 0, %v138
    %v140 = vrot.slane %v135, %v139
    %v142 = vmul.f32 %v133, %v140
    %v143 = vmul.f32 %v134, %v140
    %v144 = vld [vmem:[%s5] sm:$0x1]
    %v146 = vlaneseq
    %v147 = vshrl.u32 %v146, 7
    %v148 = vsub.s32 0, %v147
    %v149 = vrot.slane %v144, %v148
    %v151 = vadd.f32 %v142, %v149
    %v152 = vadd.f32 %v143, %v149
    %v153 = vmax.f32 %v151, 0.0
    %v154 = vmax.f32 %v152, 0.0
    %v155 = vpack.c.bf16 %v154, %v153
    %v156 = vld [vmem:[%s6] sm:$0xf]
    %v157 = vld [vmem:[%s6 + $0x4] sm:$0xf]
    %v158 = vld [vmem:[%s6 + $0x8] sm:$0xf]
    %v159 = vld [vmem:[%s6 + $0xc] sm:$0xf]
    %v160 = vld [vmem:[%s6 + $0x10] sm:$0xf]
    %v161 = vld [vmem:[%s6 + $0x14] sm:$0xf]
    %v162 = vld [vmem:[%s6 + $0x18] sm:$0xf]
    %v163 = vld [vmem:[%s6 + $0x1c] sm:$0xf]
    %v164 = vld [vmem:[%s6 + $0x20] sm:$0xf]
    %v165 = vld [vmem:[%s6 + $0x24] sm:$0xf]
    %v166 = vld [vmem:[%s6 + $0x28] sm:$0xf]
    %v167 = vld [vmem:[%s6 + $0x2c] sm:$0xf]
    %v168 = vld [vmem:[%s6 + $0x30] sm:$0xf]
    %v169 = vld [vmem:[%s6 + $0x34] sm:$0xf]
    %v170 = vld [vmem:[%s6 + $0x38] sm:$0xf]
    %v171 = vld [vmem:[%s6 + $0x3c] sm:$0xf]
    %v172 = vld [vmem:[%s7] sm:$0x1]
    %v174 = vlaneseq
    %v175 = vshrl.u32 %v174, 7
    %v176 = vsub.s32 0, %v175
    %v177 = vrot.slane %v172, %v176
    %v195 = vunpack.c.l.b16 %v156
    %v196 = vunpack.c.l.b16 %v157
    %v197 = vunpack.c.l.b16 %v158
    %v198 = vunpack.c.l.b16 %v159
    %v199 = vunpack.c.l.b16 %v160
    %v200 = vunpack.c.l.b16 %v161
    %v201 = vunpack.c.l.b16 %v162
    %v202 = vunpack.c.l.b16 %v163
    %v203 = vunpack.c.l.b16 %v164
    %v204 = vunpack.c.l.b16 %v165
    %v205 = vunpack.c.l.b16 %v166
    %v206 = vunpack.c.l.b16 %v167
    %v207 = vunpack.c.l.b16 %v168
    %v208 = vunpack.c.l.b16 %v169
    %v209 = vunpack.c.l.b16 %v170
    %v210 = vunpack.c.l.b16 %v171
    %v211 = vpack.c.b16 %v196, %v195
    %v212 = vpack.c.b16 %v198, %v197
    %v213 = vpack.c.b16 %v200, %v199
    %v214 = vpack.c.b16 %v202, %v201
    %v215 = vpack.c.b16 %v204, %v203
    %v216 = vpack.c.b16 %v206, %v205
    %v217 = vpack.c.b16 %v208, %v207
    %v218 = vpack.c.b16 %v210, %v209
    %227 = vmatprep.subr.bf16.mxu0 0
    %228 = vmatpush1.bf16.msra.mxu0 %v211
    %229 = vmatprep.subr.bf16.mxu0 0
    %230 = vmatpush1.bf16.msra.mxu0 %v212
    %231 = vmatprep.subr.bf16.mxu0 0
    %232 = vmatpush1.bf16.msra.mxu0 %v213
    %233 = vmatprep.subr.bf16.mxu0 0
    %234 = vmatpush1.bf16.msra.mxu0 %v214
    %235 = vmatprep.subr.bf16.mxu0 0
    %236 = vmatpush1.bf16.msra.mxu0 %v215
    %237 = vmatprep.subr.bf16.mxu0 0
    %238 = vmatpush1.bf16.msra.mxu0 %v216
    %239 = vmatprep.subr.bf16.mxu0 0
    %240 = vmatpush1.bf16.msra.mxu0 %v217
    %241 = vmatprep.subr.bf16.mxu0 0
    %242 = vmatpush1.bf16.msra.mxu0 %v218
    %243 = vmatprep.subr.bf16.mxu0 0
    %244 = vmatpush1.bf16.msra.mxu0 0
    %245 = vmatprep.subr.bf16.mxu0 0
    %246 = vmatpush1.bf16.msra.mxu0 0
    %247 = vmatprep.subr.bf16.mxu0 0
    %248 = vmatpush1.bf16.msra.mxu0 0
    %249 = vmatprep.subr.bf16.mxu0 0
    %250 = vmatpush1.bf16.msra.mxu0 0
    %251 = vmatprep.subr.bf16.mxu0 0
    %252 = vmatpush1.bf16.msra.mxu0 0
    %253 = vmatprep.subr.bf16.mxu0 0
    %254 = vmatpush1.bf16.msra.mxu0 0
    %255 = vmatprep.subr.bf16.mxu0 0
    %256 = vmatpush1.bf16.msra.mxu0 0
    %257 = vmatprep.subr.bf16.mxu0 0
    %258 = vmatpush1.bf16.msra.mxu0 0
    %259 = vmatprep.mubr.bf16.mxu0 0
    %260 = vmatmul.mubr.bf16.gmra.mrb[0].mxu0 %v155
    %v261 = vpop.f32.mrb[0].mxu0
    %v262 = vadd.f32 %v177, %v261
    %v263 = vpop.f32.mrb[0].mxu0
    %v264 = vpop.f32.mrb[0].mxu0
    %v265 = vadd.f32 %v177, %v264
    %v266 = vpop.f32.mrb[0].mxu0
    %267 = vdwg.mxu0
    %v268 = vld [vmem:[%s1] sm:$0xff]
    %v269 = vld [vmem:[%s1 + $0x8] sm:$0xff]
    %vm270 = vcmp.gt.f32.partialorder %v268, 0.0
    %vm271 = vcmp.gt.f32.partialorder %v269, 0.0
    %v272 = vsel %vm270, 1, 0
    %v273 = vsel %vm271, 1, 0
    %v274 = vcvt.s32.f32 %v272
    %v275 = vcvt.s32.f32 %v273
    %v276 = vpack.c.bf16 %v275, %v274
    %v277 = vlaneseq
    %v278 = vshrl.u32 %v277, 7
    %v279 = vadd.s32 %v278, 8
    %v280 = vlaneseq
    %v281 = vand.u32 %v280, 127
    %vm282 = vcmp.eq.s32.totalorder %v278, %v281
    %vm283 = vcmp.eq.s32.totalorder %v279, %v281
    %v284 = vsel %vm282, 1, 0
    %v285 = vsel %vm283, 1, 0
    %v286 = vcvt.s32.f32 %v284
    %v287 = vcvt.s32.f32 %v285
    %v288 = vpack.c.bf16 %v287, %v286
    %vm289 = vcmask 130048
    %v291 = vsel %vm289, %v276, 0
    %293 = vmatprep.subr.bf16.mxu0 0
    %294 = vmatpush1.bf16.msra.mxu0 %v288
    %295 = vmatprep.subr.bf16.mxu0 0
    %296 = vmatpush1.bf16.msra.mxu0 0
    %297 = vmatprep.subr.bf16.mxu0 0
    %298 = vmatpush1.bf16.msra.mxu0 0
    %299 = vmatprep.subr.bf16.mxu0 0
    %300 = vmatpush1.bf16.msra.mxu0 0
    %301 = vmatprep.subr.bf16.mxu0 0
    %302 = vmatpush1.bf16.msra.mxu0 0
    %303 = vmatprep.subr.bf16.mxu0 0
    %304 = vmatpush1.bf16.msra.mxu0 0
    %305 = vmatprep.subr.bf16.mxu0 0
    %306 = vmatpush1.bf16.msra.mxu0 0
    %307 = vmatprep.subr.bf16.mxu0 0
    %308 = vmatpush1.bf16.msra.mxu0 0
    %309 = vmatprep.subr.bf16.mxu0 0
    %310 = vmatpush1.bf16.msra.mxu0 0
    %311 = vmatprep.subr.bf16.mxu0 0
    %312 = vmatpush1.bf16.msra.mxu0 0
    %313 = vmatprep.subr.bf16.mxu0 0
    %314 = vmatpush1.bf16.msra.mxu0 0
    %315 = vmatprep.subr.bf16.mxu0 0
    %316 = vmatpush1.bf16.msra.mxu0 0
    %317 = vmatprep.subr.bf16.mxu0 0
    %318 = vmatpush1.bf16.msra.mxu0 0
    %319 = vmatprep.subr.bf16.mxu0 0
    %320 = vmatpush1.bf16.msra.mxu0 0
    %321 = vmatprep.subr.bf16.mxu0 0
    %322 = vmatpush1.bf16.msra.mxu0 0
    %323 = vmatprep.subr.bf16.mxu0 0
    %324 = vmatpush1.bf16.msra.mxu0 0
    %325 = vmatprep.mubr.bf16.mxu0 0
    %326 = vmatmul.mubr.bf16.gmra.mrb[0].mxu0 %v291
    %v327 = vpop.f32.mrb[0].mxu0
    %v328 = vadd.f32 0.0, %v327
    %v329 = vpop.f32.mrb[0].mxu0
    %v330 = vpop.f32.mrb[0].mxu0
    %v331 = vadd.f32 0.0, %v330
    %v332 = vpop.f32.mrb[0].mxu0
    %333 = vdwg.mxu0
    %vm334 = vcmp.gt.f32.partialorder %v328, 0.0
    %vm335 = vcmp.gt.f32.partialorder %v331, 0.0
    %v336 = vsel %vm334, %v262, -1e+09
    %v337 = vsel %vm335, %v265, -1e+09
    %v338 = vpack.c.bf16 %v337, %v336
    %v340 = vunpack.c.l.b16 %v338
    %v341 = vunpack.c.h.b16 %v338
    %v342 = vpack.c.b16 %v340, %v340
    %v343 = vpack.c.b16 %v341, %v341
    %346 = vst [vmem:[#allocation2] sm:$0xf] %v342
    %347 = vst [vmem:[#allocation2 + $0x4] sm:$0xf] %v343
    %348 = vmax.xlane.f32.xlu0 %v336
    %v349 = vpop.xlane.xlu0 %348
    %350 = vmax.xlane.f32.xlu0 %v337
    %v351 = vpop.xlane.xlu0 %350
    %v352 = vsub.f32 %v336, %v349
    %v353 = vsub.f32 %v337, %v351
    %v354 = vmul.f32 %v352, 1.442695
    %v355 = vpow.pop %v354
    %v356 = vmul.f32 %v353, 1.442695
    %v357 = vpow.pop %v356
    %358 = vadd.xlane.f32.xlu0 %v355
    %v359 = vpop.xlane.xlu0 %358
    %360 = vadd.xlane.f32.xlu0 %v357
    %v361 = vpop.xlane.xlu0 %360
    %v362 = vrcp.pop %v359
    %v363 = vmul.f32 1.0, %v362
    %v364 = vrcp.pop %v361
    %v365 = vmul.f32 1.0, %v364
    %v366 = vmul.f32 %v355, %v363
    %v367 = vmul.f32 %v357, %v365
    %368 = vst [vmem:[#allocation4] sm:$0xff] %v366
    %369 = vst [vmem:[#allocation4 + $0x8] sm:$0xff] %v367
    // Predicated region
    $region34: #{action_head_forward.1} parent=1 // pred_check
      _
    $region35: #{action_head_forward.1} parent=1 // pred_check_branch
      %371 = sbr.rel (0) target = $region37
    $region36: #{action_head_forward.1} parent=1 // pred_region
      %s373 = ssub.s32 128, 128
      %374 = vsyncadd [#allocation3], %s373
      %s375 = sshll.u32 [#allocation2], 4
      %s376 = int_to_ptr.vmem [resolvable:$true] %s375
      %381 = dma.vmem_to_hbm [thread:$0]  %s376, 128, %s8, [#allocation3], 64, 64, 4
    $region37: #{action_head_forward.1} parent=1 // pred_fallthru
      _
    // Predicated region
    $region38: #{action_head_forward.1} parent=1 // pred_check
      _
    $region39: #{action_head_forward.1} parent=1 // pred_check_branch
      %383 = sbr.rel (0) target = $region41
    $region40: #{action_head_forward.1} parent=1 // pred_region
      %s385 = ssub.s32 256, 256
      %386 = vsyncadd [#allocation5], %s385
      %s387 = sshll.u32 [#allocation4], 4
      %s388 = int_to_ptr.vmem [resolvable:$true] %s387
      %393 = dma.vmem_to_hbm [thread:$0]  %s388, 256, %s9, [#allocation5], 128, 128, 8
    $region41: #{action_head_forward.1} parent=1 // pred_fallthru
      _
    // Predicated region
    $region42: #{action_head_forward.1} parent=1 // pred_check
      _
    $region43: #{action_head_forward.1} parent=1 // pred_check_branch
      %395 = sbr.rel (0) target = $region45
    $region44: #{action_head_forward.1} parent=1 // pred_region
      %396 = dma.done [#allocation3], 128
    $region45: #{action_head_forward.1} parent=1 // pred_fallthru
      _
    // Predicated region
    $region46: #{action_head_forward.1} parent=1 // pred_check
      _
    $region47: #{action_head_forward.1} parent=1 // pred_check_branch
      %398 = sbr.rel (0) target = $region49
    $region48: #{action_head_forward.1} parent=1 // pred_region
      %399 = dma.done [#allocation5], 256
    $region49: #{action_head_forward.1} parent=1 // pred_fallthru
      _
    %400 = vsyncpa [#allocation3], 1
    %401 = vsyncpa [#allocation5], 1

</llo_original>
